<compile_context>
chip_gen: v7x
topology: tpu7x:2x2x1
jax: 0.10.0
libtpu: 0.0.40
codegen_flags: <defaults>
</compile_context>

<pallas_src>
import functools

import jax
import jax.numpy as jnp
from jax.experimental import pallas as pl
from jax.experimental.pallas import tpu as pltpu


def _tailor_kernel(x_ref, mask_ref, gamma_ref, beta_ref,
                   wff_ref, bff_ref, wq_ref, bq_ref, wk_ref, bk_ref,
                   out_ref, *, num_heads):
    BB, S, D = x_ref.shape
    hdim = wq_ref.shape[1]
    H = num_heads
    dh = hdim // H
    N = BB * S

    x_in = x_ref[...].astype(jnp.float32).reshape(N, D)            # (N, D)

    # ---- FF branch: LayerNorm(eps=1e-12) -> Linear -> (Dropout: id) -> ReLU
    mu = jnp.mean(x_in, axis=-1, keepdims=True)
    msq = jnp.mean(x_in * x_in, axis=-1, keepdims=True)
    var = jnp.maximum(msq - mu * mu, 0.0)        # clamp: one-pass stats can cancel
    hn = (x_in - mu) * jax.lax.rsqrt(var + 1e-12)
    hn = hn * gamma_ref[...] + beta_ref[...]                       # (N, D) * (1, D)
    h = jnp.dot(hn.astype(jnp.bfloat16), wff_ref[...],
                preferred_element_type=jnp.float32) + bff_ref[...]
    h = jnp.maximum(h, 0.0)
    # TODO(synk): dropout layers are identity here (inference / eval mode).
    x = x_in + h                                                   # residual, f32
    xb = x.astype(jnp.bfloat16)

    # ---- single lane-dense Q/K projections (reducer + in_proj + scale pre-folded)
    q = jnp.dot(xb, wq_ref[...], preferred_element_type=jnp.float32) + bq_ref[...]
    k = jnp.dot(xb, wk_ref[...], preferred_element_type=jnp.float32) + bk_ref[...]

    # Split heads only for the logits: static lane slices + stack (data movement
    # only), then ONE batched MXU pass over all (head, batch) pairs.
    def split_heads(t):                                            # (N, hdim) f32
        parts = [t[:, i * dh:(i + 1) * dh].reshape(BB, S, dh) for i in range(H)]
        return jnp.stack(parts, axis=0).reshape(H * BB, S, dh).astype(jnp.bfloat16)

    qh = split_heads(q)
    kh = split_heads(k)
    logits = jnp.einsum("nqe,nke->nqk", qh, kh,
                        preferred_element_type=jnp.float32)        # (H*BB, S, S)
    logits = logits.reshape(H, BB, S, S)

    # key_padding_mask: 1.0 -> masked key -> large negative additive bias.
    # (-1e30 rather than -inf: a fully-masked row becomes uniform instead of the
    #  NaN PyTorch would produce for that degenerate edge case.)
    bias = mask_ref[:, 0, :] * (-1e30)                             # (BB, S)
    logits = logits + bias[None, :, None, :]

    # Batched softmax over keys, then head-average.
    m = jnp.max(logits, axis=-1, keepdims=True)
    p = jnp.exp(logits - m)
    denom = jnp.sum(p, axis=-1, keepdims=True)
    probs = p * pl.reciprocal(denom, approx=True)                  # EUP, not VALU div
    nqk = jnp.mean(probs, axis=0)                                  # (BB, S, S)

    # out = NQK @ x (batched), stored lane-dense as a (BB, 1, S*D) slab.
    out = jnp.einsum("bqk,bkd->bqd", nqk.astype(jnp.bfloat16),
                     xb.reshape(BB, S, D),
                     preferred_element_type=jnp.float32)           # (BB, S, D)
    out_ref[...] = out.reshape(BB, 1, S * D).astype(out_ref.dtype)


def tailor_forward(inputs, key_padding_mask, params, num_heads, batch_block=None):
    B, S, D = inputs.shape
    hdim = params["wqr"].shape[1]
    H = num_heads
    dh = hdim // H
    scale = 1.0 / (dh ** 0.5)

    # Fold dim-reducer -> in_proj(q/k) into single effective (D, hdim) matrices and
    # fold the 1/sqrt(dh) attention scale into the Q side (wrapper-side, done once).
    wq_eff = ((params["wqr"] @ params["wq"]) * scale).astype(jnp.bfloat16)
    bq_eff = ((params["bqr"] @ params["wq"] + params["bq"]) * scale).astype(jnp.float32)
    wk_eff = (params["wqr"] @ params["wk"]).astype(jnp.bfloat16)
    bk_eff = (params["bqr"] @ params["wk"] + params["bk"]).astype(jnp.float32)

    wff = params["wff"].astype(jnp.bfloat16)
    bff = params["bff"].astype(jnp.float32)
    gamma = params["gamma"].astype(jnp.float32)
    beta = params["beta"].astype(jnp.float32)
    # (B, 1, S) so a batch block of 1 keeps the last-two-dims tiling legal.
    mask_f = key_padding_mask.astype(jnp.float32).reshape(B, 1, S)

    # Default the batch block so the grid has >= 2 steps: on v7x the "parallel"
    # axis then shards across both TensorCores; on v5e/v6e the extra grid step
    # costs ~0.35us.  Shrink BB further if production B/S/D outgrow VMEM.
    if batch_block is None:
        batch_block = B // 2 if (B % 2 == 0 and B >= 2) else B
    BB = batch_block
    assert B % BB == 0, "batch must be divisible by the batch block"

    kernel = functools.partial(_tailor_kernel, num_heads=H)
    full = lambda shp: pl.BlockSpec(shp, lambda b: (0,) * len(shp))

    out_flat = pl.pallas_call(
        kernel,
        out_shape=jax.ShapeDtypeStruct((B, 1, S * D), inputs.dtype),
        grid=(B // BB,),
        in_specs=[
            pl.BlockSpec((BB, S, D), lambda b: (b, 0, 0)),     # inputs
            pl.BlockSpec((BB, 1, S), lambda b: (b, 0, 0)),     # key_padding_mask
            full((1, D)), full((1, D)),                        # LN gamma, beta
            full((D, D)), full((1, D)),                        # FF weight (in,out), bias
            full((D, hdim)), full((1, hdim)),                  # fused, scaled W_q / b_q
            full((D, hdim)), full((1, hdim)),                  # fused W_k / b_k
        ],
        out_specs=pl.BlockSpec((BB, 1, S * D), lambda b: (b, 0, 0)),
        compiler_params=pltpu.CompilerParams(
            dimension_semantics=("parallel",),
            vmem_limit_bytes=32 * 1024 * 1024),
    )(inputs, mask_f, gamma, beta, wff, bff, wq_eff, bq_eff, wk_eff, bk_eff)
    return out_flat.reshape(B, S, D)


def tailor_reference(inputs, key_padding_mask, p, num_heads):
    """Pure-JAX f32 reference (unfused math) for the correctness check."""
    x_in = inputs.astype(jnp.float32)
    mu = x_in.mean(-1, keepdims=True)
    var = ((x_in - mu) ** 2).mean(-1, keepdims=True)
    h = (x_in - mu) / jnp.sqrt(var + 1e-12) * p["gamma"][0] + p["beta"][0]
    h = jnp.maximum(h @ p["wff"] + p["bff"][0], 0.0)
    x = x_in + h
    q_in = x @ p["wqr"] + p["bqr"][0]
    q = q_in @ p["wq"] + p["bq"][0]
    k = q_in @ p["wk"] + p["bk"][0]
    B, S, hdim = q.shape
    dh = hdim // num_heads
    q = q.reshape(B, S, num_heads, dh).transpose(0, 2, 1, 3)
    k = k.reshape(B, S, num_heads, dh).transpose(0, 2, 1, 3)
    logits = jnp.einsum("bhid,bhjd->bhij", q, k) / jnp.sqrt(dh)
    logits = logits + (key_padding_mask.astype(jnp.float32) * (-1e30))[:, None, None, :]
    nqk = jax.nn.softmax(logits, axis=-1).mean(axis=1)
    return jnp.einsum("bij,bjd->bid", nqk, x)


if __name__ == "__main__":
    B, S, D = 2, 8, 32          # batch, seq, input_size
    hdim, num_heads = 16, 4

    key = jax.random.PRNGKey(0)
    ks = jax.random.split(key, 8)

    inputs = jax.random.normal(ks[0], (B, S, D), dtype=jnp.float32)
    # True (1) = masked key. Batch 0 unmasked, batch 1 masks the last 3 keys.
    key_padding_mask = jnp.zeros((B, S), dtype=bool).at[1, S - 3:].set(True)

    params = {
        "gamma": jnp.ones((1, D), jnp.float32),           # LayerNorm defaults
        "beta": jnp.zeros((1, D), jnp.float32),
        "wff": 0.05 * jax.random.normal(ks[1], (D, D), jnp.float32),      # (in, out)
        "bff": 0.05 * jax.random.normal(ks[2], (1, D), jnp.float32),
        "wqr": 0.1 * jax.random.normal(ks[3], (D, hdim), jnp.float32),    # xavier-like
        "bqr": jnp.zeros((1, hdim), jnp.float32),
        "wq": 0.1 * jax.random.normal(ks[4], (hdim, hdim), jnp.float32),  # in_proj q-part
        "bq": jnp.zeros((1, hdim), jnp.float32),
        "wk": 0.1 * jax.random.normal(ks[5], (hdim, hdim), jnp.float32),  # in_proj k-part
        "bk": jnp.zeros((1, hdim), jnp.float32),
    }

    out = tailor_forward(inputs, key_padding_mask, params, num_heads)
    out = jax.block_until_ready(out)

    ref = tailor_reference(inputs, key_padding_mask, params, num_heads)
    assert out.shape == (B, S, D)
    # bf16 MXU operands + approx reciprocal -> loosen the f32-reference tolerance.
    assert jnp.allclose(out, ref, rtol=2e-2, atol=2e-2), "mismatch vs reference"

    print("KERNEL_OK")
</pallas_src>

<mosaic_0001>
module attributes {stable_mosaic.version = 11 : i64} {
  func.func @_tailor_kernel(%arg0: i32, %arg1: memref<1x8x32xf32, #tpu.memory_space<vmem>>, %arg2: memref<1x1x8xf32, #tpu.memory_space<vmem>>, %arg3: memref<1x32xf32, #tpu.memory_space<vmem>>, %arg4: memref<1x32xf32, #tpu.memory_space<vmem>>, %arg5: memref<32x32xbf16, #tpu.memory_space<vmem>>, %arg6: memref<1x32xf32, #tpu.memory_space<vmem>>, %arg7: memref<32x16xbf16, #tpu.memory_space<vmem>>, %arg8: memref<1x16xf32, #tpu.memory_space<vmem>>, %arg9: memref<32x16xbf16, #tpu.memory_space<vmem>>, %arg10: memref<1x16xf32, #tpu.memory_space<vmem>>, %arg11: memref<1x1x256xf32, #tpu.memory_space<vmem>>) attributes {dimension_semantics = [#tpu.dimension_semantics<parallel>], iteration_bounds = array<i64: 2>, scalar_prefetch = 0 : i64, scratch_operands = 0 : i64, tpu.core_type = #tpu.core_type<tc>, window_params = [{transform_indices = @transform_0, window_bounds = array<i64: 1, 8, 32>}, {transform_indices = @transform_1, window_bounds = array<i64: 1, 1, 8>}, {pipeline_mode = #tpu.pipeline_mode<synchronous>, transform_indices = @transform_2, window_bounds = array<i64: 1, 32>}, {pipeline_mode = #tpu.pipeline_mode<synchronous>, transform_indices = @transform_3, window_bounds = array<i64: 1, 32>}, {pipeline_mode = #tpu.pipeline_mode<synchronous>, transform_indices = @transform_4, window_bounds = array<i64: 32, 32>}, {pipeline_mode = #tpu.pipeline_mode<synchronous>, transform_indices = @transform_5, window_bounds = array<i64: 1, 32>}, {pipeline_mode = #tpu.pipeline_mode<synchronous>, transform_indices = @transform_6, window_bounds = array<i64: 32, 16>}, {pipeline_mode = #tpu.pipeline_mode<synchronous>, transform_indices = @transform_7, window_bounds = array<i64: 1, 16>}, {pipeline_mode = #tpu.pipeline_mode<synchronous>, transform_indices = @transform_8, window_bounds = array<i64: 32, 16>}, {pipeline_mode = #tpu.pipeline_mode<synchronous>, transform_indices = @transform_9, window_bounds = array<i64: 1, 16>}, {transform_indices = @transform_10, window_bounds = array<i64: 1, 1, 256>}]} {
    %c0 = arith.constant 0 : index
    %c0_0 = arith.constant 0 : index
    %c0_1 = arith.constant 0 : index
    %0 = vector.load %arg1[%c0, %c0_0, %c0_1] : memref<1x8x32xf32, #tpu.memory_space<vmem>>, vector<1x8x32xf32>
    %1 = vector.shape_cast %0 : vector<1x8x32xf32> to vector<8x32xf32>
    %cst = arith.constant dense<0.000000e+00> : vector<8xf32>
    %2 = vector.multi_reduction <add>, %1, %cst [1] : vector<8x32xf32> to vector<8xf32>
    %3 = vector.shape_cast %2 : vector<8xf32> to vector<8x1xf32>
    %cst_2 = arith.constant 3.200000e+01 : f32
    %4 = vector.broadcast %cst_2 : f32 to vector<8x1xf32>
    %5 = arith.divf %3, %4 : vector<8x1xf32>
    %6 = arith.mulf %1, %1 : vector<8x32xf32>
    %cst_3 = arith.constant dense<0.000000e+00> : vector<8xf32>
    %7 = vector.multi_reduction <add>, %6, %cst_3 [1] : vector<8x32xf32> to vector<8xf32>
    %8 = vector.shape_cast %7 : vector<8xf32> to vector<8x1xf32>
    %cst_4 = arith.constant 3.200000e+01 : f32
    %9 = vector.broadcast %cst_4 : f32 to vector<8x1xf32>
    %10 = arith.divf %8, %9 : vector<8x1xf32>
    %11 = arith.mulf %5, %5 : vector<8x1xf32>
    %12 = arith.subf %10, %11 : vector<8x1xf32>
    %cst_5 = arith.constant 0.000000e+00 : f32
    %13 = vector.broadcast %cst_5 : f32 to vector<8x1xf32>
    %14 = arith.maximumf %12, %13 : vector<8x1xf32>
    %15 = vector.broadcast %5 : vector<8x1xf32> to vector<8x32xf32>
    %16 = arith.subf %1, %15 : vector<8x32xf32>
    %cst_6 = arith.constant 9.99999996E-13 : f32
    %17 = vector.broadcast %cst_6 : f32 to vector<8x1xf32>
    %18 = arith.addf %14, %17 : vector<8x1xf32>
    %19 = math.rsqrt %18 : vector<8x1xf32>
    %20 = vector.broadcast %19 : vector<8x1xf32> to vector<8x32xf32>
    %21 = arith.mulf %16, %20 : vector<8x32xf32>
    %c0_7 = arith.constant 0 : index
    %c0_8 = arith.constant 0 : index
    %22 = vector.load %arg3[%c0_7, %c0_8] : memref<1x32xf32, #tpu.memory_space<vmem>>, vector<1x32xf32>
    %23 = vector.broadcast %22 : vector<1x32xf32> to vector<8x32xf32>
    %24 = arith.mulf %21, %23 : vector<8x32xf32>
    %c0_9 = arith.constant 0 : index
    %c0_10 = arith.constant 0 : index
    %25 = vector.load %arg4[%c0_9, %c0_10] : memref<1x32xf32, #tpu.memory_space<vmem>>, vector<1x32xf32>
    %26 = vector.broadcast %25 : vector<1x32xf32> to vector<8x32xf32>
    %27 = arith.addf %24, %26 : vector<8x32xf32>
    %28 = arith.truncf %27 : vector<8x32xf32> to vector<8x32xbf16>
    %c0_11 = arith.constant 0 : index
    %c0_12 = arith.constant 0 : index
    %29 = vector.load %arg5[%c0_11, %c0_12] : memref<32x32xbf16, #tpu.memory_space<vmem>>, vector<32x32xbf16>
    %cst_13 = arith.constant dense<0.000000e+00> : vector<8x32xf32>
    %30 = tpu.matmul %28, %29, %cst_13 {dimension_numbers = #tpu.dot_dimension_numbers<[1], [0], [0], [1], [0, 0, 1, 1], [], []>} : vector<8x32xbf16>, vector<32x32xbf16>, vector<8x32xf32> -> vector<8x32xf32>
    %c0_14 = arith.constant 0 : index
    %c0_15 = arith.constant 0 : index
    %31 = vector.load %arg6[%c0_14, %c0_15] : memref<1x32xf32, #tpu.memory_space<vmem>>, vector<1x32xf32>
    %32 = vector.broadcast %31 : vector<1x32xf32> to vector<8x32xf32>
    %33 = arith.addf %30, %32 : vector<8x32xf32>
    %cst_16 = arith.constant 0.000000e+00 : f32
    %34 = vector.broadcast %cst_16 : f32 to vector<8x32xf32>
    %35 = arith.maximumf %33, %34 : vector<8x32xf32>
    %36 = arith.addf %1, %35 : vector<8x32xf32>
    %37 = arith.truncf %36 : vector<8x32xf32> to vector<8x32xbf16>
    %c0_17 = arith.constant 0 : index
    %c0_18 = arith.constant 0 : index
    %38 = vector.load %arg7[%c0_17, %c0_18] : memref<32x16xbf16, #tpu.memory_space<vmem>>, vector<32x16xbf16>
    %cst_19 = arith.constant dense<0.000000e+00> : vector<8x16xf32>
    %39 = tpu.matmul %37, %38, %cst_19 {dimension_numbers = #tpu.dot_dimension_numbers<[1], [0], [0], [1], [0, 0, 1, 1], [], []>} : vector<8x32xbf16>, vector<32x16xbf16>, vector<8x16xf32> -> vector<8x16xf32>
    %c0_20 = arith.constant 0 : index
    %c0_21 = arith.constant 0 : index
    %40 = vector.load %arg8[%c0_20, %c0_21] : memref<1x16xf32, #tpu.memory_space<vmem>>, vector<1x16xf32>
    %41 = vector.broadcast %40 : vector<1x16xf32> to vector<8x16xf32>
    %42 = arith.addf %39, %41 : vector<8x16xf32>
    %c0_22 = arith.constant 0 : index
    %c0_23 = arith.constant 0 : index
    %43 = vector.load %arg9[%c0_22, %c0_23] : memref<32x16xbf16, #tpu.memory_space<vmem>>, vector<32x16xbf16>
    %cst_24 = arith.constant dense<0.000000e+00> : vector<8x16xf32>
    %44 = tpu.matmul %37, %43, %cst_24 {dimension_numbers = #tpu.dot_dimension_numbers<[1], [0], [0], [1], [0, 0, 1, 1], [], []>} : vector<8x32xbf16>, vector<32x16xbf16>, vector<8x16xf32> -> vector<8x16xf32>
    %c0_25 = arith.constant 0 : index
    %c0_26 = arith.constant 0 : index
    %45 = vector.load %arg10[%c0_25, %c0_26] : memref<1x16xf32, #tpu.memory_space<vmem>>, vector<1x16xf32>
    %46 = vector.broadcast %45 : vector<1x16xf32> to vector<8x16xf32>
    %47 = arith.addf %44, %46 : vector<8x16xf32>
    %48 = vector.extract_strided_slice %42 {offsets = [0, 0], sizes = [8, 4], strides = [1, 1]} : vector<8x16xf32> to vector<8x4xf32>
    %49 = vector.shape_cast %48 : vector<8x4xf32> to vector<1x8x4xf32>
    %50 = vector.extract_strided_slice %42 {offsets = [0, 4], sizes = [8, 4], strides = [1, 1]} : vector<8x16xf32> to vector<8x4xf32>
    %51 = vector.shape_cast %50 : vector<8x4xf32> to vector<1x8x4xf32>
    %52 = vector.extract_strided_slice %42 {offsets = [0, 8], sizes = [8, 4], strides = [1, 1]} : vector<8x16xf32> to vector<8x4xf32>
    %53 = vector.shape_cast %52 : vector<8x4xf32> to vector<1x8x4xf32>
    %54 = vector.extract_strided_slice %42 {offsets = [0, 12], sizes = [8, 4], strides = [1, 1]} : vector<8x16xf32> to vector<8x4xf32>
    %55 = vector.shape_cast %54 : vector<8x4xf32> to vector<1x8x4xf32>
    %56 = vector.shape_cast %49 : vector<1x8x4xf32> to vector<1x1x8x4xf32>
    %57 = vector.shape_cast %51 : vector<1x8x4xf32> to vector<1x1x8x4xf32>
    %58 = vector.shape_cast %53 : vector<1x8x4xf32> to vector<1x1x8x4xf32>
    %59 = vector.shape_cast %55 : vector<1x8x4xf32> to vector<1x1x8x4xf32>
    %60 = tpu.concatenate %56, %57, %58, %59 in 0 : vector<1x1x8x4xf32>, vector<1x1x8x4xf32>, vector<1x1x8x4xf32>, vector<1x1x8x4xf32> -> vector<4x1x8x4xf32>
    %61 = vector.shape_cast %60 : vector<4x1x8x4xf32> to vector<4x8x4xf32>
    %62 = arith.truncf %61 : vector<4x8x4xf32> to vector<4x8x4xbf16>
    %63 = vector.extract_strided_slice %47 {offsets = [0, 0], sizes = [8, 4], strides = [1, 1]} : vector<8x16xf32> to vector<8x4xf32>
    %64 = vector.shape_cast %63 : vector<8x4xf32> to vector<1x8x4xf32>
    %65 = vector.extract_strided_slice %47 {offsets = [0, 4], sizes = [8, 4], strides = [1, 1]} : vector<8x16xf32> to vector<8x4xf32>
    %66 = vector.shape_cast %65 : vector<8x4xf32> to vector<1x8x4xf32>
    %67 = vector.extract_strided_slice %47 {offsets = [0, 8], sizes = [8, 4], strides = [1, 1]} : vector<8x16xf32> to vector<8x4xf32>
    %68 = vector.shape_cast %67 : vector<8x4xf32> to vector<1x8x4xf32>
    %69 = vector.extract_strided_slice %47 {offsets = [0, 12], sizes = [8, 4], strides = [1, 1]} : vector<8x16xf32> to vector<8x4xf32>
    %70 = vector.shape_cast %69 : vector<8x4xf32> to vector<1x8x4xf32>
    %71 = vector.shape_cast %64 : vector<1x8x4xf32> to vector<1x1x8x4xf32>
    %72 = vector.shape_cast %66 : vector<1x8x4xf32> to vector<1x1x8x4xf32>
    %73 = vector.shape_cast %68 : vector<1x8x4xf32> to vector<1x1x8x4xf32>
    %74 = vector.shape_cast %70 : vector<1x8x4xf32> to vector<1x1x8x4xf32>
    %75 = tpu.concatenate %71, %72, %73, %74 in 0 : vector<1x1x8x4xf32>, vector<1x1x8x4xf32>, vector<1x1x8x4xf32>, vector<1x1x8x4xf32> -> vector<4x1x8x4xf32>
    %76 = vector.shape_cast %75 : vector<4x1x8x4xf32> to vector<4x8x4xf32>
    %77 = arith.truncf %76 : vector<4x8x4xf32> to vector<4x8x4xbf16>
    "tpu.trace_start"() <{level = 10 : i32, message = "nqe,nke->nqk"}> : () -> ()
    %cst_27 = arith.constant dense<0.000000e+00> : vector<4x8x8xf32>
    %78 = tpu.matmul %62, %77, %cst_27 {dimension_numbers = #tpu.dot_dimension_numbers<[2], [2], [1], [1], [0, 0, 0, 1, 1, 1], [0], [0]>} : vector<4x8x4xbf16>, vector<4x8x4xbf16>, vector<4x8x8xf32> -> vector<4x8x8xf32>
    "tpu.trace_stop"() : () -> ()
    %79 = vector.shape_cast %78 : vector<4x8x8xf32> to vector<4x1x8x8xf32>
    %c0_28 = arith.constant 0 : index
    %c0_29 = arith.constant 0 : index
    %c0_30 = arith.constant 0 : index
    %80 = vector.load %arg2[%c0_28, %c0_29, %c0_30] : memref<1x1x8xf32, #tpu.memory_space<vmem>>, vector<1x1x8xf32>
    %81 = vector.shape_cast %80 : vector<1x1x8xf32> to vector<1x8xf32>
    %cst_31 = arith.constant -1.000000e+30 : f32
    %82 = vector.broadcast %cst_31 : f32 to vector<1x8xf32>
    %83 = arith.mulf %81, %82 : vector<1x8xf32>
    %84 = vector.shape_cast %83 : vector<1x8xf32> to vector<1x1x1x8xf32>
    %85 = vector.broadcast %84 : vector<1x1x1x8xf32> to vector<4x1x8x8xf32>
    %86 = arith.addf %79, %85 : vector<4x1x8x8xf32>
    %cst_32 = arith.constant dense<0xFF800000> : vector<4x1x8xf32>
    %87 = vector.multi_reduction <maximumf>, %86, %cst_32 [3] : vector<4x1x8x8xf32> to vector<4x1x8xf32>
    %88 = vector.shape_cast %87 : vector<4x1x8xf32> to vector<4x1x8x1xf32>
    %89 = vector.broadcast %88 : vector<4x1x8x1xf32> to vector<4x1x8x8xf32>
    %90 = arith.subf %86, %89 : vector<4x1x8x8xf32>
    %91 = math.exp %90 : vector<4x1x8x8xf32>
    %cst_33 = arith.constant dense<0.000000e+00> : vector<4x1x8xf32>
    %92 = vector.multi_reduction <add>, %91, %cst_33 [3] : vector<4x1x8x8xf32> to vector<4x1x8xf32>
    %93 = vector.shape_cast %92 : vector<4x1x8xf32> to vector<4x1x8x1xf32>
    %94 = tpu.reciprocal %93 {approx = true} : vector<4x1x8x1xf32> -> vector<4x1x8x1xf32>
    %95 = vector.broadcast %94 : vector<4x1x8x1xf32> to vector<4x1x8x8xf32>
    %96 = arith.mulf %91, %95 : vector<4x1x8x8xf32>
    %cst_34 = arith.constant dense<0.000000e+00> : vector<1x8x8xf32>
    %97 = vector.multi_reduction <add>, %96, %cst_34 [0] : vector<4x1x8x8xf32> to vector<1x8x8xf32>
    %cst_35 = arith.constant 4.000000e+00 : f32
    %98 = vector.broadcast %cst_35 : f32 to vector<1x8x8xf32>
    %99 = arith.divf %97, %98 : vector<1x8x8xf32>
    %100 = arith.truncf %99 : vector<1x8x8xf32> to vector<1x8x8xbf16>
    %101 = vector.shape_cast %37 : vector<8x32xbf16> to vector<1x8x32xbf16>
    "tpu.trace_start"() <{level = 10 : i32, message = "bqk,bkd->bqd"}> : () -> ()
    %cst_36 = arith.constant dense<0.000000e+00> : vector<1x8x32xf32>
    %102 = tpu.matmul %100, %101, %cst_36 {dimension_numbers = #tpu.dot_dimension_numbers<[2], [1], [1], [2], [0, 0, 0, 1, 1, 2], [0], [0]>} : vector<1x8x8xbf16>, vector<1x8x32xbf16>, vector<1x8x32xf32> -> vector<1x8x32xf32>
    "tpu.trace_stop"() : () -> ()
    %103 = vector.shape_cast %102 : vector<1x8x32xf32> to vector<1x1x256xf32>
    %c0_37 = arith.constant 0 : index
    %c0_38 = arith.constant 0 : index
    %c0_39 = arith.constant 0 : index
    %104 = vector.load %arg11[%c0_37, %c0_38, %c0_39] : memref<1x1x256xf32, #tpu.memory_space<vmem>>, vector<1x1x256xf32>
    tpu.vector_store %arg11[%c0_37, %c0_38, %c0_39], %103 {strides = array<i32>} : memref<1x1x256xf32, #tpu.memory_space<vmem>>, vector<1x1x256xf32>,
    return
  }
  func.func @transform_0(%arg0: i32) -> (i32, i32, i32) {
    %c0_i32 = arith.constant 0 : i32
    %c0_i32_0 = arith.constant 0 : i32
    %c0_i32_1 = arith.constant 0 : i32
    return %arg0, %c0_i32, %c0_i32_0 : i32, i32, i32
  }
  func.func @transform_1(%arg0: i32) -> (i32, i32, i32) {
    %c0_i32 = arith.constant 0 : i32
    %c0_i32_0 = arith.constant 0 : i32
    %c0_i32_1 = arith.constant 0 : i32
    return %arg0, %c0_i32, %c0_i32_0 : i32, i32, i32
  }
  func.func @transform_2(%arg0: i32) -> (i32, i32) {
    %c0_i32 = arith.constant 0 : i32
    %c0_i32_0 = arith.constant 0 : i32
    %c0_i32_1 = arith.constant 0 : i32
    return %c0_i32, %c0_i32_0 : i32, i32
  }
  func.func @transform_3(%arg0: i32) -> (i32, i32) {
    %c0_i32 = arith.constant 0 : i32
    %c0_i32_0 = arith.constant 0 : i32
    %c0_i32_1 = arith.constant 0 : i32
    return %c0_i32, %c0_i32_0 : i32, i32
  }
  func.func @transform_4(%arg0: i32) -> (i32, i32) {
    %c0_i32 = arith.constant 0 : i32
    %c0_i32_0 = arith.constant 0 : i32
    %c0_i32_1 = arith.constant 0 : i32
    return %c0_i32, %c0_i32_0 : i32, i32
  }
  func.func @transform_5(%arg0: i32) -> (i32, i32) {
    %c0_i32 = arith.constant 0 : i32
    %c0_i32_0 = arith.constant 0 : i32
    %c0_i32_1 = arith.constant 0 : i32
    return %c0_i32, %c0_i32_0 : i32, i32
  }
  func.func @transform_6(%arg0: i32) -> (i32, i32) {
    %c0_i32 = arith.constant 0 : i32
    %c0_i32_0 = arith.constant 0 : i32
    %c0_i32_1 = arith.constant 0 : i32
    return %c0_i32, %c0_i32_0 : i32, i32
  }
  func.func @transform_7(%arg0: i32) -> (i32, i32) {
    %c0_i32 = arith.constant 0 : i32
    %c0_i32_0 = arith.constant 0 : i32
    %c0_i32_1 = arith.constant 0 : i32
    return %c0_i32, %c0_i32_0 : i32, i32
  }
  func.func @transform_8(%arg0: i32) -> (i32, i32) {
    %c0_i32 = arith.constant 0 : i32
    %c0_i32_0 = arith.constant 0 : i32
    %c0_i32_1 = arith.constant 0 : i32
    return %c0_i32, %c0_i32_0 : i32, i32
  }
  func.func @transform_9(%arg0: i32) -> (i32, i32) {
    %c0_i32 = arith.constant 0 : i32
    %c0_i32_0 = arith.constant 0 : i32
    %c0_i32_1 = arith.constant 0 : i32
    return %c0_i32, %c0_i32_0 : i32, i32
  }
  func.func @transform_10(%arg0: i32) -> (i32, i32, i32) {
    %c0_i32 = arith.constant 0 : i32
    %c0_i32_0 = arith.constant 0 : i32
    %c0_i32_1 = arith.constant 0 : i32
    return %arg0, %c0_i32, %c0_i32_0 : i32, i32, i32
  }
}

</mosaic_0001>

<llo_original>
// kernel: tpu_custom_call.1
$region0: #{tpu_custom_call.1}
  #allocation0 [shape = 'u32[]', space=smem, size = 0x4, offset = 0x4, fixed_abs, tag = 'smem constant byte address 0x4 - core index']
  #allocation1 [shape = 'u32[144,128]{1,0:T(1,128)}', space=vmem, size = 0x12000, scoped, tag = 'internal scratch']
  %s0 = inlined_call_operand.vmem [shape: f32[2,8,32], index: 0, kind: input, shape index: {}]
  %s1 = inlined_call_operand.vmem [shape: f32[2,1,8], index: 1, kind: input, shape index: {}]
  %s2 = inlined_call_operand.vmem [shape: f32[1,32], index: 2, kind: input, shape index: {}]
  %s3 = inlined_call_operand.vmem [shape: f32[1,32], index: 3, kind: input, shape index: {}]
  %s4 = inlined_call_operand.vmem [shape: bf16[32,32], index: 4, kind: input, shape index: {}]
  %s5 = inlined_call_operand.vmem [shape: f32[1,32], index: 5, kind: input, shape index: {}]
  %s6 = inlined_call_operand.vmem [shape: bf16[32,16], index: 6, kind: input, shape index: {}]
  %s7 = inlined_call_operand.vmem [shape: f32[1,16], index: 7, kind: input, shape index: {}]
  %s8 = inlined_call_operand.vmem [shape: bf16[32,16], index: 8, kind: input, shape index: {}]
  %s9 = inlined_call_operand.vmem [shape: f32[1,16], index: 9, kind: input, shape index: {}]
  %s10 = inlined_call_operand.hbm [shape: f32[2,1,256], index: 10, kind: output, shape index: {}]
  %s11 = sld [smem:[#allocation0]]
  $region73: #{tpu_custom_call.1} parent=0
    _
  %s13 = ssub.s32 1, %s11
  %s14 = scalar_select 0, %s13, %s11
  $region1: #{tpu_custom_call.1} parent=0
    #allocation2 [shape = 'u8[2048]{0}', space=vmem, size = 0x800, scoped, tag = 'output window, operand 0']
    #allocation3 [shape = 's32[2]{0}', space=sflag, size = 0x8, scoped, tag = 'scoped memory for tpu_custom_call.1']
    %15 = vsyncpa [#allocation3], 0
    %s16 = scalar_lea.sflag [#allocation3], 1
    %17 = vsyncpa %s16, 0
    loop: start=0, step=1, limit=4
    $region2: #{tpu_custom_call.1} parent=1 // loop_pre_header
      _
    $region3: #{tpu_custom_call.1} parent=1 // loop_header
      %s19 = sphi 0, %s23
      %p20 = scmp.ge.s32.totalorder %s19, 4
      %s29 = sphi 0, %s31
      %s32 = sphi 0, %s29
      %s33 = sphi 0, %s32
      %s49 = sphi 0, %s33
      %s55 = sphi 0, %s57
      %s58 = sphi 0, %s55
      %s59 = sphi 0, %s58
      %s75 = sphi 0, %s59
      %s79 = sphi 0, %s79
      %s81 = sphi 0, %s79
      %s82 = sphi 0, %s81
      %s96 = sphi 0, %s82
      %s100 = sphi 0, %s100
      %s102 = sphi 0, %s100
      %s103 = sphi 0, %s102
      %s117 = sphi 0, %s103
      %s121 = sphi 0, %s121
      %s123 = sphi 0, %s121
      %s124 = sphi 0, %s123
      %s138 = sphi 0, %s124
      %s142 = sphi 0, %s142
      %s144 = sphi 0, %s142
      %s145 = sphi 0, %s144
      %s159 = sphi 0, %s145
      %s163 = sphi 0, %s163
      %s165 = sphi 0, %s163
      %s166 = sphi 0, %s165
      %s180 = sphi 0, %s166
      %s184 = sphi 0, %s184
      %s186 = sphi 0, %s184
      %s187 = sphi 0, %s186
      %s201 = sphi 0, %s187
      %s205 = sphi 0, %s205
      %s207 = sphi 0, %s205
      %s208 = sphi 0, %s207
      %s222 = sphi 0, %s208
      %s226 = sphi 0, %s226
      %s228 = sphi 0, %s226
      %s229 = sphi 0, %s228
      %s243 = sphi 0, %s229
      %s249 = sphi 0, %s251
      %s252 = sphi 0, %s249
      %s253 = sphi 0, %s252
      %s269 = sphi 0, %s253
    $region4: #{tpu_custom_call.1} parent=1 // loop_header_branch
      %22 = sbr.rel (%p20) target = $region8
    $region5: #{tpu_custom_call.1} parent=1 // loop_body
      %s24 = ssub.s32 %s19, 1
      %s25 = ssub.s32 %s19, 2
      %s26 = sadd.s32 %s19, 1
      %s27 = ssub.s32 %s19, %s26
      %p28 = scmp.eq.s32.totalorder %s27, 0
      %s30 = sadd.s32 %s29, 1
      %s31 = scalar_select %p28, %s29, %s30
      %p34 = pneg %p28
      %p35 = scmp.eq.s32.totalorder %s19, 1
      %p36 = por %p34, %p35
      %p37 = scmp.ne.s32.totalorder %s29, %s32
      %p38 = scmp.eq.s32.totalorder %s19, 0
      %p39 = por %p37, %p38
      %p40 = scmp.ne.s32.totalorder %s29, %s32
      %p41 = scmp.eq.s32.totalorder %s24, 1
      %p42 = por %p40, %p41
      %p43 = scmp.ne.s32.totalorder %s32, %s33
      %p44 = scmp.eq.s32.totalorder %s24, 0
      %p45 = por %p43, %p44
      %p46 = scmp.ne.s32.totalorder %s32, %s33
      %p47 = scmp.eq.s32.totalorder %s25, 1
      %p48 = por %p46, %p47
      %p50 = scmp.ne.s32.totalorder %s33, %s49
      %p51 = scmp.eq.s32.totalorder %s25, 0
      %p52 = por %p50, %p51
      %s53 = ssub.s32 %s19, %s26
      %p54 = scmp.eq.s32.totalorder %s53, 0
      %s56 = sadd.s32 %s55, 1
      %s57 = scalar_select %p54, %s55, %s56
      %p60 = pneg %p54
      %p61 = scmp.eq.s32.totalorder %s19, 1
      %p62 = por %p60, %p61
      %p63 = scmp.ne.s32.totalorder %s55, %s58
      %p64 = scmp.eq.s32.totalorder %s19, 0
      %p65 = por %p63, %p64
      %p66 = scmp.ne.s32.totalorder %s55, %s58
      %p67 = scmp.eq.s32.totalorder %s24, 1
      %p68 = por %p66, %p67
      %p69 = scmp.ne.s32.totalorder %s58, %s59
      %p70 = scmp.eq.s32.totalorder %s24, 0
      %p71 = por %p69, %p70
      %p72 = scmp.ne.s32.totalorder %s58, %s59
      %p73 = scmp.eq.s32.totalorder %s25, 1
      %p74 = por %p72, %p73
      %p76 = scmp.ne.s32.totalorder %s59, %s75
      %p77 = scmp.eq.s32.totalorder %s25, 0
      %p78 = por %p76, %p77
      %s80 = sadd.s32 %s79, 1
      %p83 = scmp.eq.s32.totalorder %s19, 1
      %p84 = scmp.ne.s32.totalorder %s79, %s81
      %p85 = scmp.eq.s32.totalorder %s19, 0
      %p86 = por %p84, %p85
      %p87 = scmp.ne.s32.totalorder %s79, %s81
      %p88 = scmp.eq.s32.totalorder %s24, 1
      %p89 = por %p87, %p88
      %p90 = scmp.ne.s32.totalorder %s81, %s82
      %p91 = scmp.eq.s32.totalorder %s24, 0
      %p92 = por %p90, %p91
      %p93 = scmp.ne.s32.totalorder %s81, %s82
      %p94 = scmp.eq.s32.totalorder %s25, 1
      %p95 = por %p93, %p94
      %p97 = scmp.ne.s32.totalorder %s82, %s96
      %p98 = scmp.eq.s32.totalorder %s25, 0
      %p99 = por %p97, %p98
      %s101 = sadd.s32 %s100, 1
      %p104 = scmp.eq.s32.totalorder %s19, 1
      %p105 = scmp.ne.s32.totalorder %s100, %s102
      %p106 = scmp.eq.s32.totalorder %s19, 0
      %p107 = por %p105, %p106
      %p108 = scmp.ne.s32.totalorder %s100, %s102
      %p109 = scmp.eq.s32.totalorder %s24, 1
      %p110 = por %p108, %p109
      %p111 = scmp.ne.s32.totalorder %s102, %s103
      %p112 = scmp.eq.s32.totalorder %s24, 0
      %p113 = por %p111, %p112
      %p114 = scmp.ne.s32.totalorder %s102, %s103
      %p115 = scmp.eq.s32.totalorder %s25, 1
      %p116 = por %p114, %p115
      %p118 = scmp.ne.s32.totalorder %s103, %s117
      %p119 = scmp.eq.s32.totalorder %s25, 0
      %p120 = por %p118, %p119
      %s122 = sadd.s32 %s121, 1
      %p125 = scmp.eq.s32.totalorder %s19, 1
      %p126 = scmp.ne.s32.totalorder %s121, %s123
      %p127 = scmp.eq.s32.totalorder %s19, 0
      %p128 = por %p126, %p127
      %p129 = scmp.ne.s32.totalorder %s121, %s123
      %p130 = scmp.eq.s32.totalorder %s24, 1
      %p131 = por %p129, %p130
      %p132 = scmp.ne.s32.totalorder %s123, %s124
      %p133 = scmp.eq.s32.totalorder %s24, 0
      %p134 = por %p132, %p133
      %p135 = scmp.ne.s32.totalorder %s123, %s124
      %p136 = scmp.eq.s32.totalorder %s25, 1
      %p137 = por %p135, %p136
      %p139 = scmp.ne.s32.totalorder %s124, %s138
      %p140 = scmp.eq.s32.totalorder %s25, 0
      %p141 = por %p139, %p140
      %s143 = sadd.s32 %s142, 1
      %p146 = scmp.eq.s32.totalorder %s19, 1
      %p147 = scmp.ne.s32.totalorder %s142, %s144
      %p148 = scmp.eq.s32.totalorder %s19, 0
      %p149 = por %p147, %p148
      %p150 = scmp.ne.s32.totalorder %s142, %s144
      %p151 = scmp.eq.s32.totalorder %s24, 1
      %p152 = por %p150, %p151
      %p153 = scmp.ne.s32.totalorder %s144, %s145
      %p154 = scmp.eq.s32.totalorder %s24, 0
      %p155 = por %p153, %p154
      %p156 = scmp.ne.s32.totalorder %s144, %s145
      %p157 = scmp.eq.s32.totalorder %s25, 1
      %p158 = por %p156, %p157
      %p160 = scmp.ne.s32.totalorder %s145, %s159
      %p161 = scmp.eq.s32.totalorder %s25, 0
      %p162 = por %p160, %p161
      %s164 = sadd.s32 %s163, 1
      %p167 = scmp.eq.s32.totalorder %s19, 1
      %p168 = scmp.ne.s32.totalorder %s163, %s165
      %p169 = scmp.eq.s32.totalorder %s19, 0
      %p170 = por %p168, %p169
      %p171 = scmp.ne.s32.totalorder %s163, %s165
      %p172 = scmp.eq.s32.totalorder %s24, 1
      %p173 = por %p171, %p172
      %p174 = scmp.ne.s32.totalorder %s165, %s166
      %p175 = scmp.eq.s32.totalorder %s24, 0
      %p176 = por %p174, %p175
      %p177 = scmp.ne.s32.totalorder %s165, %s166
      %p178 = scmp.eq.s32.totalorder %s25, 1
      %p179 = por %p177, %p178
      %p181 = scmp.ne.s32.totalorder %s166, %s180
      %p182 = scmp.eq.s32.totalorder %s25, 0
      %p183 = por %p181, %p182
      %s185 = sadd.s32 %s184, 1
      %p188 = scmp.eq.s32.totalorder %s19, 1
      %p189 = scmp.ne.s32.totalorder %s184, %s186
      %p190 = scmp.eq.s32.totalorder %s19, 0
      %p191 = por %p189, %p190
      %p192 = scmp.ne.s32.totalorder %s184, %s186
      %p193 = scmp.eq.s32.totalorder %s24, 1
      %p194 = por %p192, %p193
      %p195 = scmp.ne.s32.totalorder %s186, %s187
      %p196 = scmp.eq.s32.totalorder %s24, 0
      %p197 = por %p195, %p196
      %p198 = scmp.ne.s32.totalorder %s186, %s187
      %p199 = scmp.eq.s32.totalorder %s25, 1
      %p200 = por %p198, %p199
      %p202 = scmp.ne.s32.totalorder %s187, %s201
      %p203 = scmp.eq.s32.totalorder %s25, 0
      %p204 = por %p202, %p203
      %s206 = sadd.s32 %s205, 1
      %p209 = scmp.eq.s32.totalorder %s19, 1
      %p210 = scmp.ne.s32.totalorder %s205, %s207
      %p211 = scmp.eq.s32.totalorder %s19, 0
      %p212 = por %p210, %p211
      %p213 = scmp.ne.s32.totalorder %s205, %s207
      %p214 = scmp.eq.s32.totalorder %s24, 1
      %p215 = por %p213, %p214
      %p216 = scmp.ne.s32.totalorder %s207, %s208
      %p217 = scmp.eq.s32.totalorder %s24, 0
      %p218 = por %p216, %p217
      %p219 = scmp.ne.s32.totalorder %s207, %s208
      %p220 = scmp.eq.s32.totalorder %s25, 1
      %p221 = por %p219, %p220
      %p223 = scmp.ne.s32.totalorder %s208, %s222
      %p224 = scmp.eq.s32.totalorder %s25, 0
      %p225 = por %p223, %p224
      %s227 = sadd.s32 %s226, 1
      %p230 = scmp.eq.s32.totalorder %s19, 1
      %p231 = scmp.ne.s32.totalorder %s226, %s228
      %p232 = scmp.eq.s32.totalorder %s19, 0
      %p233 = por %p231, %p232
      %p234 = scmp.ne.s32.totalorder %s226, %s228
      %p235 = scmp.eq.s32.totalorder %s24, 1
      %p236 = por %p234, %p235
      %p237 = scmp.ne.s32.totalorder %s228, %s229
      %p238 = scmp.eq.s32.totalorder %s24, 0
      %p239 = por %p237, %p238
      %p240 = scmp.ne.s32.totalorder %s228, %s229
      %p241 = scmp.eq.s32.totalorder %s25, 1
      %p242 = por %p240, %p241
      %p244 = scmp.ne.s32.totalorder %s229, %s243
      %p245 = scmp.eq.s32.totalorder %s25, 0
      %p246 = por %p244, %p245
      %s247 = ssub.s32 %s19, %s26
      %p248 = scmp.eq.s32.totalorder %s247, 0
      %s250 = sadd.s32 %s249, 1
      %s251 = scalar_select %p248, %s249, %s250
      %p254 = pneg %p248
      %p255 = scmp.eq.s32.totalorder %s19, 1
      %p256 = por %p254, %p255
      %p257 = scmp.ne.s32.totalorder %s249, %s252
      %p258 = scmp.eq.s32.totalorder %s19, 0
      %p259 = por %p257, %p258
      %p260 = scmp.ne.s32.totalorder %s249, %s252
      %p261 = scmp.eq.s32.totalorder %s24, 1
      %p262 = por %p260, %p261
      %p263 = scmp.ne.s32.totalorder %s252, %s253
      %p264 = scmp.eq.s32.totalorder %s24, 0
      %p265 = por %p263, %p264
      %p266 = scmp.ne.s32.totalorder %s252, %s253
      %p267 = scmp.eq.s32.totalorder %s25, 1
      %p268 = por %p266, %p267
      %p270 = scmp.ne.s32.totalorder %s253, %s269
      %p271 = scmp.eq.s32.totalorder %s25, 0
      %p272 = por %p270, %p271
      %p273 = scmp.le.s32.totalorder 1, %s19
      %p274 = scmp.lt.s32.totalorder %s19, 3
      %p275 = pnand %p273, %p274
      %p276 = pneg %p275
      // Predicated region
      $region9: #{tpu_custom_call.1} parent=5 // pred_check
        _
      $region10: #{tpu_custom_call.1} parent=5 // pred_check_branch
        %278 = sbr.rel (%p275) target = $region12
      $region11: #{tpu_custom_call.1} parent=5 // pred_region
        %s279 = ssub.s32 %s19, 1
        // Predicated region
        $region13: #{tpu_custom_call.1} parent=11 // pred_check
          %p280 = pneg %p92
        $region14: #{tpu_custom_call.1} parent=11 // pred_check_branch
          %282 = sbr.rel (%p280) target = $region16
        $region15: #{tpu_custom_call.1} parent=11 // pred_region
          _
        $region16: #{tpu_custom_call.1} parent=11 // pred_fallthru
          _
        // Predicated region
        $region17: #{tpu_custom_call.1} parent=11 // pred_check
          %p283 = pneg %p113
        $region18: #{tpu_custom_call.1} parent=11 // pred_check_branch
          %285 = sbr.rel (%p283) target = $region20
        $region19: #{tpu_custom_call.1} parent=11 // pred_region
          _
        $region20: #{tpu_custom_call.1} parent=11 // pred_fallthru
          _
        // Predicated region
        $region21: #{tpu_custom_call.1} parent=11 // pred_check
          %p286 = pneg %p134
        $region22: #{tpu_custom_call.1} parent=11 // pred_check_branch
          %288 = sbr.rel (%p286) target = $region24
        $region23: #{tpu_custom_call.1} parent=11 // pred_region
          _
        $region24: #{tpu_custom_call.1} parent=11 // pred_fallthru
          _
        // Predicated region
        $region25: #{tpu_custom_call.1} parent=11 // pred_check
          %p289 = pneg %p155
        $region26: #{tpu_custom_call.1} parent=11 // pred_check_branch
          %291 = sbr.rel (%p289) target = $region28
        $region27: #{tpu_custom_call.1} parent=11 // pred_region
          _
        $region28: #{tpu_custom_call.1} parent=11 // pred_fallthru
          _
        // Predicated region
        $region29: #{tpu_custom_call.1} parent=11 // pred_check
          %p292 = pneg %p176
        $region30: #{tpu_custom_call.1} parent=11 // pred_check_branch
          %294 = sbr.rel (%p292) target = $region32
        $region31: #{tpu_custom_call.1} parent=11 // pred_region
          _
        $region32: #{tpu_custom_call.1} parent=11 // pred_fallthru
          _
        // Predicated region
        $region33: #{tpu_custom_call.1} parent=11 // pred_check
          %p295 = pneg %p197
        $region34: #{tpu_custom_call.1} parent=11 // pred_check_branch
          %297 = sbr.rel (%p295) target = $region36
        $region35: #{tpu_custom_call.1} parent=11 // pred_region
          _
        $region36: #{tpu_custom_call.1} parent=11 // pred_fallthru
          _
        // Predicated region
        $region37: #{tpu_custom_call.1} parent=11 // pred_check
          %p298 = pneg %p218
        $region38: #{tpu_custom_call.1} parent=11 // pred_check_branch
          %300 = sbr.rel (%p298) target = $region40
        $region39: #{tpu_custom_call.1} parent=11 // pred_region
          _
        $region40: #{tpu_custom_call.1} parent=11 // pred_fallthru
          _
        // Predicated region
        $region41: #{tpu_custom_call.1} parent=11 // pred_check
          %p301 = pneg %p239
        $region42: #{tpu_custom_call.1} parent=11 // pred_check_branch
          %303 = sbr.rel (%p301) target = $region44
        $region43: #{tpu_custom_call.1} parent=11 // pred_region
          _
        $region44: #{tpu_custom_call.1} parent=11 // pred_fallthru
          _
      $region12: #{tpu_custom_call.1} parent=5 // pred_fallthru
        _
      %p304 = scmp.lt.s32.totalorder %s19, 2
      // Predicated region
      $region45: #{tpu_custom_call.1} parent=5 // pred_check
        %p305 = pneg %p304
      $region46: #{tpu_custom_call.1} parent=5 // pred_check_branch
        %307 = sbr.rel (%p305) target = $region48
      $region47: #{tpu_custom_call.1} parent=5 // pred_region
        // Predicated region
        $region49: #{tpu_custom_call.1} parent=47 // pred_check
          %p308 = pneg %p39
        $region50: #{tpu_custom_call.1} parent=47 // pred_check_branch
          %310 = sbr.rel (%p308) target = $region52
        $region51: #{tpu_custom_call.1} parent=47 // pred_region
          %p311 = scmp.lt.s32.totalorder %s19, 1
          %s312 = scalar_select %p311, %s19, 1
          %s313 = smul.addr %s312, 8
          %s314 = scalar_lea.vmem %s0, %s313
        $region52: #{tpu_custom_call.1} parent=47 // pred_fallthru
          _
        // Predicated region
        $region53: #{tpu_custom_call.1} parent=47 // pred_check
          %p315 = pneg %p65
        $region54: #{tpu_custom_call.1} parent=47 // pred_check_branch
          %317 = sbr.rel (%p315) target = $region56
        $region55: #{tpu_custom_call.1} parent=47 // pred_region
          %p318 = scmp.lt.s32.totalorder %s19, 1
          %s319 = scalar_select %p318, %s19, 1
          %s320 = scalar_lea.vmem %s1, %s319
        $region56: #{tpu_custom_call.1} parent=47 // pred_fallthru
          _
      $region48: #{tpu_custom_call.1} parent=5 // pred_fallthru
        _
      %p321 = scmp.le.s32.totalorder 1, %s19
      %p322 = scmp.lt.s32.totalorder %s19, 3
      %p323 = pnand %p321, %p322
      %p324 = pneg %p323
      // Predicated region
      $region57: #{tpu_custom_call.1} parent=5 // pred_check
        _
      $region58: #{tpu_custom_call.1} parent=5 // pred_check_branch
        %326 = sbr.rel (%p323) target = $region60
      $region59: #{tpu_custom_call.1} parent=5 // pred_region
        %s327 = ssub.s32 %s19, 1
        %p328 = scmp.lt.s32.totalorder %s24, 1
        %s329 = scalar_select %p328, %s24, 1
        %s330 = smul.addr %s329, 8
        %s331 = scalar_lea.vmem %s0, %s330
        %p332 = pneg %p45
        %p333 = pneg %p42
        %p334 = scmp.lt.s32.totalorder %s24, 1
        %s335 = scalar_select %p334, %s24, 1
        %s336 = scalar_lea.vmem %s1, %s335
        %p337 = pneg %p71
        %p338 = pneg %p68
        %p339 = pneg %p92
        %p340 = pneg %p89
        %p341 = pneg %p113
        %p342 = pneg %p110
        %p343 = pneg %p134
        %p344 = pneg %p131
        %p345 = pneg %p155
        %p346 = pneg %p152
        %p347 = pneg %p176
        %p348 = pneg %p173
        %p349 = pneg %p197
        %p350 = pneg %p194
        %p351 = pneg %p218
        %p352 = pneg %p215
        %p353 = pneg %p239
        %p354 = pneg %p236
        %p355 = pneg %p265
        %p356 = pneg %p262
        %s357 = sand.u32 %s252, 1
        %s358 = scalar_lea.sflag [#allocation3], %s357
        %s359 = sand.u32 %s252, 1
        %s360 = smul.addr %s359, 2
        %s361 = scalar_lea.vmem [#allocation2], %s360
        %p362 = scmp.lt.s32.totalorder %s24, 1
        %s363 = scalar_select %p362, %s24, 1
        %s364 = smul.addr %s363, 8
        %s365 = scalar_lea.vmem %s0, %s364
        %p366 = scmp.lt.s32.totalorder %s24, 1
        %s367 = scalar_select %p366, %s24, 1
        %s368 = scalar_lea.vmem %s1, %s367
        %v370 = vld [vmem:[%s365] sm:$0xff]
        %vm371 = vcmask 261120
        %v372 = vsel %vm371, %v370, 0.0
        %373 = vadd.xlane.f32.xlu0 %v372
        %v374 = vpop.xlane.xlu0 %373
        %v375 = vrcp.pop 32.0
        %v376 = vmul.f32 %v374, %v375
        %v377 = vmul.f32 %v370, %v370
        %v378 = vsel %vm371, %v377, 0.0
        %379 = vadd.xlane.f32.xlu0 %v378
        %v380 = vpop.xlane.xlu0 %379
        %v381 = vmul.f32 %v380, %v375
        %v382 = vmul.f32 %v376, %v376
        %v383 = vsub.f32 %v381, %v382
        %v384 = vmax.f32 %v383, 0.0
        %v385 = vsub.f32 %v370, %v376
        %v386 = vadd.f32 %v384, 1e-12
        %v387 = vrsqrt.pop %v386
        %v388 = vmul.f32 %v385, %v387
        %v389 = vld [vmem:[%s2] sm:$0x1]
        %v391 = vlaneseq
        %v392 = vshrl.u32 %v391, 7
        %v393 = vsub.s32 0, %v392
        %v394 = vrot.slane %v389, %v393
        %v396 = vmul.f32 %v388, %v394
        %v397 = vld [vmem:[%s3] sm:$0x1]
        %v399 = vlaneseq
        %v400 = vshrl.u32 %v399, 7
        %v401 = vsub.s32 0, %v400
        %v402 = vrot.slane %v397, %v401
        %v404 = vadd.f32 %v396, %v402
        %v405 = vpack.c.bf16 %v404, %v404
        %v406 = vld [vmem:[%s4] sm:$0xf]
        %v407 = vld [vmem:[%s4 + $0x4] sm:$0xf]
        %v408 = vld [vmem:[%s4 + $0x8] sm:$0xf]
        %v409 = vld [vmem:[%s4 + $0xc] sm:$0xf]
        %v410 = vld [vmem:[%s5] sm:$0x1]
        %v412 = vlaneseq
        %v413 = vshrl.u32 %v412, 7
        %v414 = vsub.s32 0, %v413
        %v415 = vrot.slane %v410, %v414
        %v421 = vunpack.c.l.b16 %v406
        %v422 = vunpack.c.l.b16 %v407
        %v423 = vunpack.c.l.b16 %v408
        %v424 = vunpack.c.l.b16 %v409
        %v425 = vpack.c.b16 %v422, %v421
        %v426 = vpack.c.b16 %v424, %v423
        %v430 = vsel %vm371, %v405, 0
        %432 = vmatprep.subr.bf16.mxu0 0
        %433 = vmatpush1.bf16.msra.mxu0 %v425
        %434 = vmatprep.subr.bf16.mxu0 0
        %435 = vmatpush1.bf16.msra.mxu0 %v426
        %436 = vmatprep.subr.bf16.mxu0 0
        %437 = vmatpush1.bf16.msra.mxu0 0
        %438 = vmatprep.subr.bf16.mxu0 0
        %439 = vmatpush1.bf16.msra.mxu0 0
        %440 = vmatprep.subr.bf16.mxu0 0
        %441 = vmatpush1.bf16.msra.mxu0 0
        %442 = vmatprep.subr.bf16.mxu0 0
        %443 = vmatpush1.bf16.msra.mxu0 0
        %444 = vmatprep.subr.bf16.mxu0 0
        %445 = vmatpush1.bf16.msra.mxu0 0
        %446 = vmatprep.subr.bf16.mxu0 0
        %447 = vmatpush1.bf16.msra.mxu0 0
        %448 = vmatprep.subr.bf16.mxu0 0
        %449 = vmatpush1.bf16.msra.mxu0 0
        %450 = vmatprep.subr.bf16.mxu0 0
        %451 = vmatpush1.bf16.msra.mxu0 0
        %452 = vmatprep.subr.bf16.mxu0 0
        %453 = vmatpush1.bf16.msra.mxu0 0
        %454 = vmatprep.subr.bf16.mxu0 0
        %455 = vmatpush1.bf16.msra.mxu0 0
        %456 = vmatprep.subr.bf16.mxu0 0
        %457 = vmatpush1.bf16.msra.mxu0 0
        %458 = vmatprep.subr.bf16.mxu0 0
        %459 = vmatpush1.bf16.msra.mxu0 0
        %460 = vmatprep.subr.bf16.mxu0 0
        %461 = vmatpush1.bf16.msra.mxu0 0
        %462 = vmatprep.subr.bf16.mxu0 0
        %463 = vmatpush1.bf16.msra.mxu0 0
        %464 = vmatprep.mubr.bf16.mxu0 0
        %465 = vmatmul.mubr.bf16.gmra.mrb[0].mxu0 %v430
        %v466 = vpop.f32.mrb[0].mxu0
        %v467 = vadd.f32 %v415, %v466
        %v468 = vpop.f32.mrb[0].mxu0
        %v469 = vpop.f32.mrb[0].mxu0
        %v470 = vpop.f32.mrb[0].mxu0
        %471 = vdwg.mxu0
        %v472 = vmax.f32 %v467, 0.0
        %v473 = vadd.f32 %v370, %v472
        %v474 = vpack.c.bf16 %v473, %v473
        %v475 = vld [vmem:[%s6] sm:$0xf]
        %v476 = vld [vmem:[%s6 + $0x4] sm:$0xf]
        %v477 = vld [vmem:[%s6 + $0x8] sm:$0xf]
        %v478 = vld [vmem:[%s6 + $0xc] sm:$0xf]
        %v479 = vld [vmem:[%s7] sm:$0x1]
        %v481 = vlaneseq
        %v482 = vshrl.u32 %v481, 7
        %v483 = vsub.s32 0, %v482
        %v484 = vrot.slane %v479, %v483
        %v490 = vunpack.c.l.b16 %v475
        %v491 = vunpack.c.l.b16 %v476
        %v492 = vunpack.c.l.b16 %v477
        %v493 = vunpack.c.l.b16 %v478
        %v494 = vpack.c.b16 %v491, %v490
        %v495 = vpack.c.b16 %v493, %v492
        %v499 = vsel %vm371, %v474, 0
        %501 = vmatprep.subr.bf16.mxu0 0
        %502 = vmatpush1.bf16.msra.mxu0 %v494
        %503 = vmatprep.subr.bf16.mxu0 0
        %504 = vmatpush1.bf16.msra.mxu0 %v495
        %505 = vmatprep.subr.bf16.mxu0 0
        %506 = vmatpush1.bf16.msra.mxu0 0
        %507 = vmatprep.subr.bf16.mxu0 0
        %508 = vmatpush1.bf16.msra.mxu0 0
        %509 = vmatprep.subr.bf16.mxu0 0
        %510 = vmatpush1.bf16.msra.mxu0 0
        %511 = vmatprep.subr.bf16.mxu0 0
        %512 = vmatpush1.bf16.msra.mxu0 0
        %513 = vmatprep.subr.bf16.mxu0 0
        %514 = vmatpush1.bf16.msra.mxu0 0
        %515 = vmatprep.subr.bf16.mxu0 0
        %516 = vmatpush1.bf16.msra.mxu0 0
        %517 = vmatprep.subr.bf16.mxu0 0
        %518 = vmatpush1.bf16.msra.mxu0 0
        %519 = vmatprep.subr.bf16.mxu0 0
        %520 = vmatpush1.bf16.msra.mxu0 0
        %521 = vmatprep.subr.bf16.mxu0 0
        %522 = vmatpush1.bf16.msra.mxu0 0
        %523 = vmatprep.subr.bf16.mxu0 0
        %524 = vmatpush1.bf16.msra.mxu0 0
        %525 = vmatprep.subr.bf16.mxu0 0
        %526 = vmatpush1.bf16.msra.mxu0 0
        %527 = vmatprep.subr.bf16.mxu0 0
        %528 = vmatpush1.bf16.msra.mxu0 0
        %529 = vmatprep.subr.bf16.mxu0 0
        %530 = vmatpush1.bf16.msra.mxu0 0
        %531 = vmatprep.subr.bf16.mxu0 0
        %532 = vmatpush1.bf16.msra.mxu0 0
        %533 = vmatprep.mubr.bf16.mxu0 0
        %534 = vmatmul.mubr.bf16.gmra.mrb[0].mxu0 %v499
        %v535 = vpop.f32.mrb[0].mxu0
        %v536 = vadd.f32 %v484, %v535
        %v537 = vpop.f32.mrb[0].mxu0
        %v538 = vpop.f32.mrb[0].mxu0
        %v539 = vpop.f32.mrb[0].mxu0
        %540 = vdwg.mxu0
        %v541 = vld [vmem:[%s8] sm:$0xf]
        %v542 = vld [vmem:[%s8 + $0x4] sm:$0xf]
        %v543 = vld [vmem:[%s8 + $0x8] sm:$0xf]
        %v544 = vld [vmem:[%s8 + $0xc] sm:$0xf]
        %v545 = vld [vmem:[%s9] sm:$0x1]
        %v547 = vlaneseq
        %v548 = vshrl.u32 %v547, 7
        %v549 = vsub.s32 0, %v548
        %v550 = vrot.slane %v545, %v549
        %v556 = vunpack.c.l.b16 %v541
        %v557 = vunpack.c.l.b16 %v542
        %v558 = vunpack.c.l.b16 %v543
        %v559 = vunpack.c.l.b16 %v544
        %v560 = vpack.c.b16 %v557, %v556
        %v561 = vpack.c.b16 %v559, %v558
        %564 = vmatprep.subr.bf16.mxu0 0
        %565 = vmatpush1.bf16.msra.mxu0 %v560
        %566 = vmatprep.subr.bf16.mxu0 0
        %567 = vmatpush1.bf16.msra.mxu0 %v561
        %568 = vmatprep.subr.bf16.mxu0 0
        %569 = vmatpush1.bf16.msra.mxu0 0
        %570 = vmatprep.subr.bf16.mxu0 0
        %571 = vmatpush1.bf16.msra.mxu0 0
        %572 = vmatprep.subr.bf16.mxu0 0
        %573 = vmatpush1.bf16.msra.mxu0 0
        %574 = vmatprep.subr.bf16.mxu0 0
        %575 = vmatpush1.bf16.msra.mxu0 0
        %576 = vmatprep.subr.bf16.mxu0 0
        %577 = vmatpush1.bf16.msra.mxu0 0
        %578 = vmatprep.subr.bf16.mxu0 0
        %579 = vmatpush1.bf16.msra.mxu0 0
        %580 = vmatprep.subr.bf16.mxu0 0
        %581 = vmatpush1.bf16.msra.mxu0 0
        %582 = vmatprep.subr.bf16.mxu0 0
        %583 = vmatpush1.bf16.msra.mxu0 0
        %584 = vmatprep.subr.bf16.mxu0 0
        %585 = vmatpush1.bf16.msra.mxu0 0
        %586 = vmatprep.subr.bf16.mxu0 0
        %587 = vmatpush1.bf16.msra.mxu0 0
        %588 = vmatprep.subr.bf16.mxu0 0
        %589 = vmatpush1.bf16.msra.mxu0 0
        %590 = vmatprep.subr.bf16.mxu0 0
        %591 = vmatpush1.bf16.msra.mxu0 0
        %592 = vmatprep.subr.bf16.mxu0 0
        %593 = vmatpush1.bf16.msra.mxu0 0
        %594 = vmatprep.subr.bf16.mxu0 0
        %595 = vmatpush1.bf16.msra.mxu0 0
        %596 = vmatprep.mubr.bf16.mxu0 0
        %597 = vmatmul.mubr.bf16.gmra.mrb[0].mxu0 %v499
        %v598 = vpop.f32.mrb[0].mxu0
        %v599 = vadd.f32 %v550, %v598
        %v600 = vpop.f32.mrb[0].mxu0
        %v601 = vpop.f32.mrb[0].mxu0
        %v602 = vpop.f32.mrb[0].mxu0
        %603 = vdwg.mxu0
        %605 = vrot.lane.b32.xlu0 %v536, 124
        %v606 = vpop.permute.xlu0 %605
        %608 = vrot.lane.b32.xlu0 %v536, 120
        %v609 = vpop.permute.xlu0 %608
        %611 = vrot.lane.b32.xlu0 %v536, 116
        %v612 = vpop.permute.xlu0 %611
        %v614 = vpack.c.bf16 %v536, %v536
        %v615 = vpack.c.bf16 %v606, %v606
        %v616 = vpack.c.bf16 %v609, %v609
        %v617 = vpack.c.bf16 %v612, %v612
        %619 = vrot.lane.b32.xlu0 %v599, 124
        %v620 = vpop.permute.xlu0 %619
        %622 = vrot.lane.b32.xlu0 %v599, 120
        %v623 = vpop.permute.xlu0 %622
        %625 = vrot.lane.b32.xlu0 %v599, 116
        %v626 = vpop.permute.xlu0 %625
        %v628 = vpack.c.bf16 %v599, %v599
        %v629 = vpack.c.bf16 %v620, %v620
        %v630 = vpack.c.bf16 %v623, %v623
        %v631 = vpack.c.bf16 %v626, %v626
        %vm632 = vcmask 31744
        %v634 = vsel %vm632, %v614, 0
        %v637 = vsel %vm632, %v628, 0
        %639 = vmatprep.subr.bf16.mxu0 0
        %640 = vmatpush1.bf16.xpose.msra.mxu0 %v637
        %641 = vmatprep.subr.bf16.mxu0 0
        %642 = vmatpush1.bf16.xpose.msra.mxu0 0
        %643 = vmatprep.subr.bf16.mxu0 0
        %644 = vmatpush1.bf16.xpose.msra.mxu0 0
        %645 = vmatprep.subr.bf16.mxu0 0
        %646 = vmatpush1.bf16.xpose.msra.mxu0 0
        %647 = vmatprep.subr.bf16.mxu0 0
        %648 = vmatpush1.bf16.xpose.msra.mxu0 0
        %649 = vmatprep.subr.bf16.mxu0 0
        %650 = vmatpush1.bf16.xpose.msra.mxu0 0
        %651 = vmatprep.subr.bf16.mxu0 0
        %652 = vmatpush1.bf16.xpose.msra.mxu0 0
        %653 = vmatprep.subr.bf16.mxu0 0
        %654 = vmatpush1.bf16.xpose.msra.mxu0 0
        %655 = vmatprep.subr.bf16.mxu0 0
        %656 = vmatpush1.bf16.xpose.msra.mxu0 0
        %657 = vmatprep.subr.bf16.mxu0 0
        %658 = vmatpush1.bf16.xpose.msra.mxu0 0
        %659 = vmatprep.subr.bf16.mxu0 0
        %660 = vmatpush1.bf16.xpose.msra.mxu0 0
        %661 = vmatprep.subr.bf16.mxu0 0
        %662 = vmatpush1.bf16.xpose.msra.mxu0 0
        %663 = vmatprep.subr.bf16.mxu0 0
        %664 = vmatpush1.bf16.xpose.msra.mxu0 0
        %665 = vmatprep.subr.bf16.mxu0 0
        %666 = vmatpush1.bf16.xpose.msra.mxu0 0
        %667 = vmatprep.subr.bf16.mxu0 0
        %668 = vmatpush1.bf16.xpose.msra.mxu0 0
        %669 = vmatprep.subr.bf16.mxu0 0
        %670 = vmatpush1.bf16.xpose.msra.mxu0 0
        %671 = vmatprep.mubr.bf16.mxu0 0
        %672 = vmatmul.mubr.bf16.gmra.mrb[0].mxu0 %v634
        %v673 = vpop.f32.mrb[0].mxu0
        %v674 = vadd.f32 0.0, %v673
        %v675 = vpop.f32.mrb[0].mxu0
        %v676 = vpop.f32.mrb[0].mxu0
        %v677 = vpop.f32.mrb[0].mxu0
        %678 = vdwg.mxu0
        %v680 = vsel %vm632, %v615, 0
        %v683 = vsel %vm632, %v629, 0
        %685 = vmatprep.subr.bf16.mxu0 0
        %686 = vmatpush1.bf16.xpose.msra.mxu0 %v683
        %687 = vmatprep.subr.bf16.mxu0 0
        %688 = vmatpush1.bf16.xpose.msra.mxu0 0
        %689 = vmatprep.subr.bf16.mxu0 0
        %690 = vmatpush1.bf16.xpose.msra.mxu0 0
        %691 = vmatprep.subr.bf16.mxu0 0
        %692 = vmatpush1.bf16.xpose.msra.mxu0 0
        %693 = vmatprep.subr.bf16.mxu0 0
        %694 = vmatpush1.bf16.xpose.msra.mxu0 0
        %695 = vmatprep.subr.bf16.mxu0 0
        %696 = vmatpush1.bf16.xpose.msra.mxu0 0
        %697 = vmatprep.subr.bf16.mxu0 0
        %698 = vmatpush1.bf16.xpose.msra.mxu0 0
        %699 = vmatprep.subr.bf16.mxu0 0
        %700 = vmatpush1.bf16.xpose.msra.mxu0 0
        %701 = vmatprep.subr.bf16.mxu0 0
        %702 = vmatpush1.bf16.xpose.msra.mxu0 0
        %703 = vmatprep.subr.bf16.mxu0 0
        %704 = vmatpush1.bf16.xpose.msra.mxu0 0
        %705 = vmatprep.subr.bf16.mxu0 0
        %706 = vmatpush1.bf16.xpose.msra.mxu0 0
        %707 = vmatprep.subr.bf16.mxu0 0
        %708 = vmatpush1.bf16.xpose.msra.mxu0 0
        %709 = vmatprep.subr.bf16.mxu0 0
        %710 = vmatpush1.bf16.xpose.msra.mxu0 0
        %711 = vmatprep.subr.bf16.mxu0 0
        %712 = vmatpush1.bf16.xpose.msra.mxu0 0
        %713 = vmatprep.subr.bf16.mxu0 0
        %714 = vmatpush1.bf16.xpose.msra.mxu0 0
        %715 = vmatprep.subr.bf16.mxu0 0
        %716 = vmatpush1.bf16.xpose.msra.mxu0 0
        %717 = vmatprep.mubr.bf16.mxu0 0
        %718 = vmatmul.mubr.bf16.gmra.mrb[0].mxu0 %v680
        %v719 = vpop.f32.mrb[0].mxu0
        %v720 = vadd.f32 0.0, %v719
        %v721 = vpop.f32.mrb[0].mxu0
        %v722 = vpop.f32.mrb[0].mxu0
        %v723 = vpop.f32.mrb[0].mxu0
        %724 = vdwg.mxu0
        %v726 = vsel %vm632, %v616, 0
        %v729 = vsel %vm632, %v630, 0
        %731 = vmatprep.subr.bf16.mxu0 0
        %732 = vmatpush1.bf16.xpose.msra.mxu0 %v729
        %733 = vmatprep.subr.bf16.mxu0 0
        %734 = vmatpush1.bf16.xpose.msra.mxu0 0
        %735 = vmatprep.subr.bf16.mxu0 0
        %736 = vmatpush1.bf16.xpose.msra.mxu0 0
        %737 = vmatprep.subr.bf16.mxu0 0
        %738 = vmatpush1.bf16.xpose.msra.mxu0 0
        %739 = vmatprep.subr.bf16.mxu0 0
        %740 = vmatpush1.bf16.xpose.msra.mxu0 0
        %741 = vmatprep.subr.bf16.mxu0 0
        %742 = vmatpush1.bf16.xpose.msra.mxu0 0
        %743 = vmatprep.subr.bf16.mxu0 0
        %744 = vmatpush1.bf16.xpose.msra.mxu0 0
        %745 = vmatprep.subr.bf16.mxu0 0
        %746 = vmatpush1.bf16.xpose.msra.mxu0 0
        %747 = vmatprep.subr.bf16.mxu0 0
        %748 = vmatpush1.bf16.xpose.msra.mxu0 0
        %749 = vmatprep.subr.bf16.mxu0 0
        %750 = vmatpush1.bf16.xpose.msra.mxu0 0
        %751 = vmatprep.subr.bf16.mxu0 0
        %752 = vmatpush1.bf16.xpose.msra.mxu0 0
        %753 = vmatprep.subr.bf16.mxu0 0
        %754 = vmatpush1.bf16.xpose.msra.mxu0 0
        %755 = vmatprep.subr.bf16.mxu0 0
        %756 = vmatpush1.bf16.xpose.msra.mxu0 0
        %757 = vmatprep.subr.bf16.mxu0 0
        %758 = vmatpush1.bf16.xpose.msra.mxu0 0
        %759 = vmatprep.subr.bf16.mxu0 0
        %760 = vmatpush1.bf16.xpose.msra.mxu0 0
        %761 = vmatprep.subr.bf16.mxu0 0
        %762 = vmatpush1.bf16.xpose.msra.mxu0 0
        %763 = vmatprep.mubr.bf16.mxu0 0
        %764 = vmatmul.mubr.bf16.gmra.mrb[0].mxu0 %v726
        %v765 = vpop.f32.mrb[0].mxu0
        %v766 = vadd.f32 0.0, %v765
        %v767 = vpop.f32.mrb[0].mxu0
        %v768 = vpop.f32.mrb[0].mxu0
        %v769 = vpop.f32.mrb[0].mxu0
        %770 = vdwg.mxu0
        %v772 = vsel %vm632, %v617, 0
        %v775 = vsel %vm632, %v631, 0
        %777 = vmatprep.subr.bf16.mxu0 0
        %778 = vmatpush1.bf16.xpose.msra.mxu0 %v775
        %779 = vmatprep.subr.bf16.mxu0 0
        %780 = vmatpush1.bf16.xpose.msra.mxu0 0
        %781 = vmatprep.subr.bf16.mxu0 0
        %782 = vmatpush1.bf16.xpose.msra.mxu0 0
        %783 = vmatprep.subr.bf16.mxu0 0
        %784 = vmatpush1.bf16.xpose.msra.mxu0 0
        %785 = vmatprep.subr.bf16.mxu0 0
        %786 = vmatpush1.bf16.xpose.msra.mxu0 0
        %787 = vmatprep.subr.bf16.mxu0 0
        %788 = vmatpush1.bf16.xpose.msra.mxu0 0
        %789 = vmatprep.subr.bf16.mxu0 0
        %790 = vmatpush1.bf16.xpose.msra.mxu0 0
        %791 = vmatprep.subr.bf16.mxu0 0
        %792 = vmatpush1.bf16.xpose.msra.mxu0 0
        %793 = vmatprep.subr.bf16.mxu0 0
        %794 = vmatpush1.bf16.xpose.msra.mxu0 0
        %795 = vmatprep.subr.bf16.mxu0 0
        %796 = vmatpush1.bf16.xpose.msra.mxu0 0
        %797 = vmatprep.subr.bf16.mxu0 0
        %798 = vmatpush1.bf16.xpose.msra.mxu0 0
        %799 = vmatprep.subr.bf16.mxu0 0
        %800 = vmatpush1.bf16.xpose.msra.mxu0 0
        %801 = vmatprep.subr.bf16.mxu0 0
        %802 = vmatpush1.bf16.xpose.msra.mxu0 0
        %803 = vmatprep.subr.bf16.mxu0 0
        %804 = vmatpush1.bf16.xpose.msra.mxu0 0
        %805 = vmatprep.subr.bf16.mxu0 0
        %806 = vmatpush1.bf16.xpose.msra.mxu0 0
        %807 = vmatprep.subr.bf16.mxu0 0
        %808 = vmatpush1.bf16.xpose.msra.mxu0 0
        %809 = vmatprep.mubr.bf16.mxu0 0
        %810 = vmatmul.mubr.bf16.gmra.mrb[0].mxu0 %v772
        %v811 = vpop.f32.mrb[0].mxu0
        %v812 = vadd.f32 0.0, %v811
        %v813 = vpop.f32.mrb[0].mxu0
        %v814 = vpop.f32.mrb[0].mxu0
        %v815 = vpop.f32.mrb[0].mxu0
        %816 = vdwg.mxu0
        %v817 = vld [vmem:[%s368] sm:$0x1]
        %v818 = vmul.f32 %v817, -1e+30
        %v820 = vlaneseq
        %v821 = vshrl.u32 %v820, 7
        %v822 = vsub.s32 0, %v821
        %v823 = vrot.slane %v818, %v822
        %v825 = vadd.f32 %v674, %v823
        %v826 = vadd.f32 %v720, %v823
        %v827 = vadd.f32 %v766, %v823
        %v828 = vadd.f32 %v812, %v823
        %vm829 = vcmask 64512
        %v830 = vsel %vm829, %v825, -inf
        %831 = vmax.xlane.f32.xlu0 %v830
        %v832 = vpop.xlane.xlu0 %831
        %v833 = vsel %vm829, %v826, -inf
        %834 = vmax.xlane.f32.xlu0 %v833
        %v835 = vpop.xlane.xlu0 %834
        %v836 = vsel %vm829, %v827, -inf
        %837 = vmax.xlane.f32.xlu0 %v836
        %v838 = vpop.xlane.xlu0 %837
        %v839 = vsel %vm829, %v828, -inf
        %840 = vmax.xlane.f32.xlu0 %v839
        %v841 = vpop.xlane.xlu0 %840
        %v842 = vsub.f32 %v825, %v832
        %v843 = vsub.f32 %v826, %v835
        %v844 = vsub.f32 %v827, %v838
        %v845 = vsub.f32 %v828, %v841
        %v846 = vmul.f32 %v842, 1.442695
        %v847 = vpow.pop %v846
        %v848 = vmul.f32 %v843, 1.442695
        %v849 = vpow.pop %v848
        %v850 = vmul.f32 %v844, 1.442695
        %v851 = vpow.pop %v850
        %v852 = vmul.f32 %v845, 1.442695
        %v853 = vpow.pop %v852
        %v854 = vsel %vm829, %v847, 0.0
        %855 = vadd.xlane.f32.xlu0 %v854
        %v856 = vpop.xlane.xlu0 %855
        %v857 = vsel %vm829, %v849, 0.0
        %858 = vadd.xlane.f32.xlu0 %v857
        %v859 = vpop.xlane.xlu0 %858
        %v860 = vsel %vm829, %v851, 0.0
        %861 = vadd.xlane.f32.xlu0 %v860
        %v862 = vpop.xlane.xlu0 %861
        %v863 = vsel %vm829, %v853, 0.0
        %864 = vadd.xlane.f32.xlu0 %v863
        %v865 = vpop.xlane.xlu0 %864
        %v866 = vrcp.pop %v856
        %v867 = vrcp.pop %v859
        %v868 = vrcp.pop %v862
        %v869 = vrcp.pop %v865
        %v870 = vmul.f32 %v847, %v866
        %v871 = vmul.f32 %v849, %v867
        %v872 = vmul.f32 %v851, %v868
        %v873 = vmul.f32 %v853, %v869
        %v874 = vsel %vm829, %v870, 0.0
        %v875 = vsel %vm829, %v871, 0.0
        %v876 = vadd.f32 %v874, %v875
        %v877 = vsel %vm829, %v872, 0.0
        %v878 = vadd.f32 %v876, %v877
        %v879 = vsel %vm829, %v873, 0.0
        %v880 = vadd.f32 %v878, %v879
        %v881 = vrcp.pop 4.0
        %v882 = vmul.f32 %v880, %v881
        %v883 = vpack.c.bf16 %v882, %v882
        %v885 = vsel %vm829, %v883, 0
        %vm887 = vcmask 1043456
        %v888 = vsel %vm887, %v474, 0
        %890 = vmatprep.subr.bf16.mxu0 0
        %891 = vmatpush1.bf16.msra.mxu0 %v888
        %892 = vmatprep.subr.bf16.mxu0 0
        %893 = vmatpush1.bf16.msra.mxu0 0
        %894 = vmatprep.subr.bf16.mxu0 0
        %895 = vmatpush1.bf16.msra.mxu0 0
        %896 = vmatprep.subr.bf16.mxu0 0
        %897 = vmatpush1.bf16.msra.mxu0 0
        %898 = vmatprep.subr.bf16.mxu0 0
        %899 = vmatpush1.bf16.msra.mxu0 0
        %900 = vmatprep.subr.bf16.mxu0 0
        %901 = vmatpush1.bf16.msra.mxu0 0
        %902 = vmatprep.subr.bf16.mxu0 0
        %903 = vmatpush1.bf16.msra.mxu0 0
        %904 = vmatprep.subr.bf16.mxu0 0
        %905 = vmatpush1.bf16.msra.mxu0 0
        %906 = vmatprep.subr.bf16.mxu0 0
        %907 = vmatpush1.bf16.msra.mxu0 0
        %908 = vmatprep.subr.bf16.mxu0 0
        %909 = vmatpush1.bf16.msra.mxu0 0
        %910 = vmatprep.subr.bf16.mxu0 0
        %911 = vmatpush1.bf16.msra.mxu0 0
        %912 = vmatprep.subr.bf16.mxu0 0
        %913 = vmatpush1.bf16.msra.mxu0 0
        %914 = vmatprep.subr.bf16.mxu0 0
        %915 = vmatpush1.bf16.msra.mxu0 0
        %916 = vmatprep.subr.bf16.mxu0 0
        %917 = vmatpush1.bf16.msra.mxu0 0
        %918 = vmatprep.subr.bf16.mxu0 0
        %919 = vmatpush1.bf16.msra.mxu0 0
        %920 = vmatprep.subr.bf16.mxu0 0
        %921 = vmatpush1.bf16.msra.mxu0 0
        %922 = vmatprep.mubr.bf16.mxu0 0
        %923 = vmatmul.mubr.bf16.gmra.mrb[0].mxu0 %v885
        %v924 = vpop.f32.mrb[0].mxu0
        %v925 = vadd.f32 0.0, %v924
        %v926 = vpop.f32.mrb[0].mxu0
        %v927 = vpop.f32.mrb[0].mxu0
        %v928 = vpop.f32.mrb[0].mxu0
        %929 = vdwg.mxu0
        %v930 = vcombine.high %v925, 0.0
        %v932 = vunpack.c.l.s4 1983009808
        %v933 = vunpack.c.0.s8 %v932
        %v934 = vlaneseq
        %v935 = vshrl.u32 %v934, 7
        %v936 = vsub.s32 %v933, %v935
        %v937 = vrot.slane %v925, %v936
        %v939 = vunpack.c.l.s4 1983009808
        %v940 = vunpack.c.0.s8 %v939
        %v941 = vlaneseq
        %v942 = vshrl.u32 %v941, 7
        %v943 = vsub.s32 %v940, %v942
        %v944 = vrot.slane %v930, %v943
        %v945 = vcombine.high %v937, 0.0
        %v947 = vunpack.c.l.s4 1934713408
        %v948 = vunpack.c.0.s8 %v947
        %v949 = vlaneseq
        %v950 = vshrl.u32 %v949, 7
        %v951 = vsub.s32 %v948, %v950
        %v952 = vrot.slane %v937, %v951
        %v954 = vunpack.c.l.s4 1934713408
        %v955 = vunpack.c.0.s8 %v954
        %v956 = vlaneseq
        %v957 = vshrl.u32 %v956, 7
        %v958 = vsub.s32 %v955, %v957
        %v959 = vrot.slane %v945, %v958
        %v960 = vcombine.high %v944, 0.0
        %v962 = vunpack.c.l.s4 1934713408
        %v963 = vunpack.c.0.s8 %v962
        %v964 = vlaneseq
        %v965 = vshrl.u32 %v964, 7
        %v966 = vsub.s32 %v963, %v965
        %v967 = vrot.slane %v944, %v966
        %v969 = vunpack.c.l.s4 1934713408
        %v970 = vunpack.c.0.s8 %v969
        %v971 = vlaneseq
        %v972 = vshrl.u32 %v971, 7
        %v973 = vsub.s32 %v970, %v972
        %v974 = vrot.slane %v960, %v973
        %v975 = vcombine.high %v952, 0.0
        %v976 = vcombine.high %v959, 0.0
        %v977 = vcombine.high %v967, 0.0
        %v978 = vcombine.high %v974, 0.0
        %980 = vrot.lane.b32.xlu0 %v975, 32
        %v981 = vpop.permute.xlu0 %980
        %984 = vrot.lane.b32.xlu0 %v959, 64
        %v985 = vpop.permute.xlu0 %984
        %988 = vrot.lane.b32.xlu0 %v976, 96
        %v989 = vpop.permute.xlu0 %988
        %992 = vrot.lane.b32.xlu0 %v977, 32
        %v993 = vpop.permute.xlu0 %992
        %996 = vrot.lane.b32.xlu0 %v974, 64
        %v997 = vpop.permute.xlu0 %996
        %1000 = vrot.lane.b32.xlu0 %v978, 96
        %v1001 = vpop.permute.xlu0 %1000
        %v1003 = vsel %vm371, %v952, %v981
        %vm1004 = vcmask 523264
        %v1005 = vsel %vm1004, %v1003, %v985
        %vm1006 = vcmask 785408
        %v1007 = vsel %vm1006, %v1005, %v989
        %v1008 = vsel %vm371, %v967, %v993
        %v1009 = vsel %vm1004, %v1008, %v997
        %v1010 = vsel %vm1006, %v1009, %v1001
        %v1013 = vcombine.low %v1007, %v1010
        %v1015 = vunpack.c.l.s4 1966171168
        %v1016 = vunpack.c.0.s8 %v1015
        %v1017 = vlaneseq
        %v1018 = vshrl.u32 %v1017, 7
        %v1019 = vsub.s32 %v1016, %v1018
        %v1020 = vrot.slane %v1013, %v1019
        %v1022 = vunpack.c.l.s4 1966171168
        %v1023 = vunpack.c.0.s8 %v1022
        %v1024 = vlaneseq
        %v1025 = vshrl.u32 %v1024, 7
        %v1026 = vsub.s32 %v1023, %v1025
        %v1027 = vrot.slane %v1020, %v1026
        %v1029 = vlaneseq
        %vm1030 = vcmp.ge.s32.totalorder %v1029, 0
        %vm1031 = vcmp.lt.s32.totalorder %v1029, 256
        %vm1032 = vmand %vm1030, %vm1031
        %1033 = vst.msk [vmem:[%s361] sm:$0x3] %vm1032, %v1027
        %s1034 = sand.u32 %s252, 1
        %s1035 = scalar_lea.sflag [#allocation3], %s1034
        %s1036 = sand.u32 %s252, 1
        %s1037 = smul.addr %s1036, 2
        %s1038 = scalar_lea.vmem [#allocation2], %s1037
        // Predicated region
        $region61: #{tpu_custom_call.1} parent=59 // pred_check
          %p1039 = pneg %p262
        $region62: #{tpu_custom_call.1} parent=59 // pred_check_branch
          %1041 = sbr.rel (%p1039) target = $region64
        $region63: #{tpu_custom_call.1} parent=59 // pred_region
          %s1043 = ssub.s32 32, 32
          %1044 = vsyncadd %s1035, %s1043
          %s1045 = smul.addr %s24, 2
          %s1046 = smul.addr %s1045, 16
          %s1047 = scalar_lea.hbm %s10, %s1046
          %s1049 = sshll.u32 %s1038, 4
          %s1050 = int_to_ptr.vmem [resolvable:$true] %s1049
          %1052 = dma.vmem_to_hbm [thread:$0]  %s1050, 32, %s1047, %s1035
        $region64: #{tpu_custom_call.1} parent=59 // pred_fallthru
          _
      $region60: #{tpu_custom_call.1} parent=5 // pred_fallthru
        _
      %p1053 = scmp.le.s32.totalorder 2, %s19
      // Predicated region
      $region65: #{tpu_custom_call.1} parent=5 // pred_check
        %p1054 = pneg %p1053
      $region66: #{tpu_custom_call.1} parent=5 // pred_check_branch
        %1056 = sbr.rel (%p1054) target = $region68
      $region67: #{tpu_custom_call.1} parent=5 // pred_region
        %s1057 = ssub.s32 %s19, 2
        // Predicated region
        $region69: #{tpu_custom_call.1} parent=67 // pred_check
          %p1058 = pneg %p268
        $region70: #{tpu_custom_call.1} parent=67 // pred_check_branch
          %1060 = sbr.rel (%p1058) target = $region72
        $region71: #{tpu_custom_call.1} parent=67 // pred_region
          %s1061 = sand.u32 %s253, 1
          %s1062 = scalar_lea.sflag [#allocation3], %s1061
          %s1063 = sand.u32 %s253, 1
          %s1064 = smul.addr %s1063, 2
          %s1065 = scalar_lea.vmem [#allocation2], %s1064
          %1066 = dma.done %s1062, 32
        $region72: #{tpu_custom_call.1} parent=67 // pred_fallthru
          _
      $region68: #{tpu_custom_call.1} parent=5 // pred_fallthru
        _
    $region6: #{tpu_custom_call.1} parent=1 // loop_footer
      %s23 = sadd.s32 1, %s19
    $region7: #{tpu_custom_call.1} parent=1 // loop_footer_branch
      %18 = sbr.rel target = $region3
    $region8: #{tpu_custom_call.1} parent=1 // loop_exit
      _
    %1067 = vsyncpa [#allocation3], 1
    %s1068 = scalar_lea.sflag [#allocation3], 1
    %1069 = vsyncpa %s1068, 1

</llo_original>
